<compile_context>
chip_gen: v7x
topology: tpu7x:2x2x1
jax: 0.10.0
libtpu: 0.0.40
codegen_flags: <defaults>
</compile_context>

<pallas_src>
import functools

import jax
import jax.numpy as jnp
from jax.experimental import pallas as pl
from jax.experimental.pallas import tpu as pltpu

_LANES = 128


# --------------------------------------------------------------------------- #
# Kernel
# --------------------------------------------------------------------------- #
def _bce_block_accum(i, pred_ref, true_ref, acc_ref, *, pos_weight, n_valid,
                     n_tiles, tile_rows, needs_mask):
    """Accumulate BCE-with-logits losses of one (tile_rows, 128) block into acc_ref."""
    x = pred_ref[...].astype(jnp.float32)
    y = true_ref[...].astype(jnp.float32)
    # Numerically stable: softplus(-x) = max(-x, 0) + log1p(exp(-|x|))
    sp = jnp.maximum(-x, 0.0) + jnp.log1p(jnp.exp(-jnp.abs(x)))
    loss = (1.0 - y) * x + (1.0 + (pos_weight - 1.0) * y) * sp

    if not needs_mask:
        acc_ref[...] += loss
        return

    # Ragged tail: interior blocks are fully valid -> no mask ops there.
    @pl.when(i < n_tiles - 1)
    def _interior():
        acc_ref[...] += loss

    @pl.when(i == n_tiles - 1)
    def _last():
        row = jax.lax.broadcasted_iota(jnp.int32, loss.shape, 0)
        lane = jax.lax.broadcasted_iota(jnp.int32, loss.shape, 1)
        gidx = (i * tile_rows + row) * _LANES + lane
        acc_ref[...] += jnp.where(gidx < n_valid, loss, 0.0)


def _fused_loss_kernel(nl_ref, ny_ref, ep_ref, et_ref, cp_ref, ct_ref,
                       out_ref,
                       ce_num_acc, ce_den_acc, e_acc, c_acc,
                       *,
                       class_weights, node_coef,
                       edge_pos_weight, edge_coef,
                       center_pos_weight, center_coef,
                       n_nodes, ce_tile, ce_tiles, ce_needs_mask,
                       n_edges, e_tile, e_tiles, e_needs_mask,
                       n_center, c_tile, c_tiles, c_needs_mask,
                       total_tiles):
    i = pl.program_id(0)

    @pl.when(i == 0)
    def _init():
        ce_num_acc[...] = jnp.zeros_like(ce_num_acc)
        ce_den_acc[...] = jnp.zeros_like(ce_den_acc)
        e_acc[...] = jnp.zeros_like(e_acc)
        c_acc[...] = jnp.zeros_like(c_acc)

    def gated(term_tiles, body):
        # Skip the runtime gate entirely when this term spans the whole grid.
        if term_tiles == total_tiles:
            body()
        else:
            pl.when(i < term_tiles)(body)

    # ---- weighted cross-entropy over a lane-dense (C, ce_tile) block -------- #
    def ce_body():
        x = nl_ref[...].astype(jnp.float32)        # (C, Tn) logits
        y = ny_ref[...].astype(jnp.int32)          # (1, Tn) labels
        m = jnp.max(x, axis=0, keepdims=True)
        lse = m + jnp.log(jnp.sum(jnp.exp(x - m), axis=0, keepdims=True))
        cls = jax.lax.broadcasted_iota(jnp.int32, x.shape, 0)
        onehot = (cls == y).astype(jnp.float32)
        picked = jnp.sum(x * onehot, axis=0, keepdims=True)
        # Static class weights folded in as scalar constants (no weight DMA).
        w_row = jnp.zeros_like(lse)
        for c, wc in enumerate(class_weights):
            w_row = jnp.where(y == c, jnp.float32(wc), w_row)
        num = w_row * (lse - picked)
        den = w_row
        if ce_needs_mask:
            col = jax.lax.broadcasted_iota(jnp.int32, lse.shape, 1)
            valid = (i * ce_tile + col) < n_nodes
            num = jnp.where(valid, num, 0.0)
            den = jnp.where(valid, den, 0.0)
        ce_num_acc[...] += num
        ce_den_acc[...] += den

    gated(ce_tiles, ce_body)

    # ---- edge BCE ------------------------------------------------------------ #
    gated(e_tiles, lambda: _bce_block_accum(
        i, ep_ref, et_ref, e_acc, pos_weight=edge_pos_weight, n_valid=n_edges,
        n_tiles=e_tiles, tile_rows=e_tile, needs_mask=e_needs_mask))

    # ---- center BCE ----------------------------------------------------------- #
    gated(c_tiles, lambda: _bce_block_accum(
        i, cp_ref, ct_ref, c_acc, pos_weight=center_pos_weight, n_valid=n_center,
        n_tiles=c_tiles, tile_rows=c_tile, needs_mask=c_needs_mask))

    # ---- finalize: single XLU reduce + scalar combine, once ------------------ #
    @pl.when(i == total_tiles - 1)
    def _finalize():
        ce_num = jnp.sum(ce_num_acc[...])
        ce_den = jnp.sum(ce_den_acc[...])
        e_sum = jnp.sum(e_acc[...])
        c_sum = jnp.sum(c_acc[...])
        out_ref[0] = (node_coef * (ce_num / ce_den)
                      + edge_coef * (e_sum / jnp.float32(n_edges))
                      + center_coef * (c_sum / jnp.float32(n_center)))


# --------------------------------------------------------------------------- #
# Wrapper
# --------------------------------------------------------------------------- #
def _bce_prep(x):
    """Present a flat stream as a lane-dense (rows, 128) slab (copy-free when len%128==0)."""
    flat = jnp.reshape(x, (-1,))
    n = int(flat.shape[0])
    rows = pl.cdiv(n, _LANES)
    if rows * _LANES != n:
        # Only ragged lengths get padded (with zeros; masked in-kernel anyway).
        flat = jnp.pad(flat, (0, rows * _LANES - n))
    return jnp.reshape(flat, (rows, _LANES)), n, rows


def fused_custom_loss(n_pred, n_true, e_pred, e_true, c_pred, c_true, *,
                      class_weights, edge_pos_weight, node_coef, edge_coef,
                      center_pos_weight=0.05, center_coef=0.5,
                      bce_tile_rows=2048, ce_tile_lanes=4096):
    n_nodes, n_classes = n_pred.shape
    assert len(class_weights) == n_classes

    # Lane-dense CE layout: logits (C, N), labels (1, N). No dtype casts here.
    nl = jnp.transpose(n_pred)
    ny = jnp.reshape(n_true, (1, n_nodes))

    ce_tile = n_nodes if n_nodes <= ce_tile_lanes else ce_tile_lanes
    ce_tiles = pl.cdiv(n_nodes, ce_tile)
    ce_needs_mask = (n_nodes != ce_tiles * ce_tile)

    ep2, n_e, rows_e = _bce_prep(e_pred)
    et2, _, _ = _bce_prep(e_true)
    cp2, n_c, rows_c = _bce_prep(c_pred)
    ct2, _, _ = _bce_prep(c_true)

    e_tile = rows_e if rows_e <= bce_tile_rows else bce_tile_rows
    e_tiles = pl.cdiv(rows_e, e_tile)
    e_needs_mask = (n_e != e_tiles * e_tile * _LANES)

    c_tile = rows_c if rows_c <= bce_tile_rows else bce_tile_rows
    c_tiles = pl.cdiv(rows_c, c_tile)
    c_needs_mask = (n_c != c_tiles * c_tile * _LANES)

    total_tiles = max(ce_tiles, e_tiles, c_tiles)

    kernel = functools.partial(
        _fused_loss_kernel,
        class_weights=tuple(float(w) for w in class_weights),
        node_coef=float(node_coef),
        edge_pos_weight=float(edge_pos_weight), edge_coef=float(edge_coef),
        center_pos_weight=float(center_pos_weight), center_coef=float(center_coef),
        n_nodes=n_nodes, ce_tile=ce_tile, ce_tiles=ce_tiles,
        ce_needs_mask=ce_needs_mask,
        n_edges=n_e, e_tile=e_tile, e_tiles=e_tiles, e_needs_mask=e_needs_mask,
        n_center=n_c, c_tile=c_tile, c_tiles=c_tiles, c_needs_mask=c_needs_mask,
        total_tiles=total_tiles)

    out = pl.pallas_call(
        kernel,
        out_shape=jax.ShapeDtypeStruct((1,), jnp.float32),
        grid=(total_tiles,),
        in_specs=[
            pl.BlockSpec((n_classes, ce_tile),
                         lambda i: (0, jnp.minimum(i, ce_tiles - 1))),
            pl.BlockSpec((1, ce_tile),
                         lambda i: (0, jnp.minimum(i, ce_tiles - 1))),
            pl.BlockSpec((e_tile, _LANES),
                         lambda i: (jnp.minimum(i, e_tiles - 1), 0)),
            pl.BlockSpec((e_tile, _LANES),
                         lambda i: (jnp.minimum(i, e_tiles - 1), 0)),
            pl.BlockSpec((c_tile, _LANES),
                         lambda i: (jnp.minimum(i, c_tiles - 1), 0)),
            pl.BlockSpec((c_tile, _LANES),
                         lambda i: (jnp.minimum(i, c_tiles - 1), 0)),
        ],
        out_specs=pl.BlockSpec(memory_space=pltpu.MemorySpace.SMEM),
        scratch_shapes=[
            pltpu.VMEM((1, ce_tile), jnp.float32),      # ce numerator partials
            pltpu.VMEM((1, ce_tile), jnp.float32),      # ce denominator partials
            pltpu.VMEM((e_tile, _LANES), jnp.float32),  # edge BCE partials
            pltpu.VMEM((c_tile, _LANES), jnp.float32),  # center BCE partials
        ],
        compiler_params=pltpu.CompilerParams(
            dimension_semantics=("arbitrary",),          # reduction axis
            vmem_limit_bytes=32 * 1024 * 1024),
    )(nl, ny, ep2, et2, cp2, ct2)
    return out[0]


class CustomLoss:
    """Pallas-backed equivalent of the PyTorch CustomLoss module."""

    def __init__(self, params):
        self.edge_pos_weight = float(params["edge_imbalance"])
        self.class_weights = tuple(float(w) for w in params["publaynet_imbalance"])
        self.edge_coef = float(params["edge_coef"])
        self.node_coef = float(params["node_coef"])

    def __call__(self, n_pred, n_true, e_pred, e_true, c_pred, c_true):
        return fused_custom_loss(
            n_pred, n_true, e_pred, e_true, c_pred, c_true,
            class_weights=self.class_weights,
            edge_pos_weight=self.edge_pos_weight,
            node_coef=self.node_coef, edge_coef=self.edge_coef,
            center_pos_weight=0.05, center_coef=0.5)


# --------------------------------------------------------------------------- #
# Pure-JAX reference (correctness check only)
# --------------------------------------------------------------------------- #
def _reference_loss(n_pred, n_true, e_pred, e_true, c_pred, c_true,
                    class_weight, edge_pos_weight, edge_coef, node_coef):
    logp = jax.nn.log_softmax(n_pred.astype(jnp.float32), axis=-1)
    nll = -jnp.take_along_axis(logp, n_true[:, None].astype(jnp.int32), axis=-1)[:, 0]
    wy = jnp.asarray(class_weight, jnp.float32)[n_true]
    ce = jnp.sum(wy * nll) / jnp.sum(wy)

    def bce(x, y, p):
        x = x.astype(jnp.float32)
        y = y.astype(jnp.float32)
        sp = jnp.maximum(-x, 0.0) + jnp.log1p(jnp.exp(-jnp.abs(x)))
        return jnp.mean((1.0 - y) * x + (1.0 + (p - 1.0) * y) * sp)

    return (node_coef * ce
            + edge_coef * bce(e_pred, e_true, edge_pos_weight)
            + 0.5 * bce(c_pred, c_true, 0.05))


if __name__ == "__main__":
    # Small graph-like shapes consistent with the module:
    #   n_pred: (num_nodes, num_classes) logits, n_true: class ids
    #   e_pred/e_true: per-edge logits / binary labels
    #   c_pred/c_true: per-node center logits / binary labels
    N_NODES, N_CLASSES, N_EDGES = 64, 5, 256

    key = jax.random.PRNGKey(0)
    kn, ke, kc, k1, k2, k3 = jax.random.split(key, 6)
    n_pred = jax.random.normal(kn, (N_NODES, N_CLASSES), jnp.float32)
    n_true = jax.random.randint(k1, (N_NODES,), 0, N_CLASSES, jnp.int32)
    e_pred = jax.random.normal(ke, (N_EDGES,), jnp.float32)
    e_true = (jax.random.uniform(k2, (N_EDGES,)) < 0.2).astype(jnp.float32)
    c_pred = jax.random.normal(kc, (N_NODES,), jnp.float32)
    c_true = (jax.random.uniform(k3, (N_NODES,)) < 0.1).astype(jnp.float32)

    params = {
        "edge_imbalance": 7.5,
        "publaynet_imbalance": [1.0, 0.8, 1.2, 1.5, 2.0],
        "edge_coef": 2.0,
        "node_coef": 1.0,
    }

    loss_fn = CustomLoss(params)
    loss = loss_fn(n_pred, n_true, e_pred, e_true, c_pred, c_true)
    jax.block_until_ready(loss)

    ref = _reference_loss(n_pred, n_true, e_pred, e_true, c_pred, c_true,
                          params["publaynet_imbalance"], params["edge_imbalance"],
                          params["edge_coef"], params["node_coef"])
    jax.block_until_ready(ref)

    assert loss.shape == (), loss.shape
    assert bool(jnp.isfinite(loss))
    assert abs(float(loss) - float(ref)) <= 1e-4 * (1.0 + abs(float(ref))), \
        (float(loss), float(ref))
    print("KERNEL_OK")
</pallas_src>

<mosaic_0001>
module attributes {stable_mosaic.version = 11 : i64} {
  func.func @_fused_loss_kernel(%arg0: i32, %arg1: memref<5x64xf32, #tpu.memory_space<vmem>>, %arg2: memref<1x64xi32, #tpu.memory_space<vmem>>, %arg3: memref<2x128xf32, #tpu.memory_space<vmem>>, %arg4: memref<2x128xf32, #tpu.memory_space<vmem>>, %arg5: memref<1x128xf32, #tpu.memory_space<vmem>>, %arg6: memref<1x128xf32, #tpu.memory_space<vmem>>, %arg7: memref<1xf32, #tpu.memory_space<smem>>, %arg8: memref<1x64xf32, #tpu.memory_space<vmem>>, %arg9: memref<1x64xf32, #tpu.memory_space<vmem>>, %arg10: memref<2x128xf32, #tpu.memory_space<vmem>>, %arg11: memref<1x128xf32, #tpu.memory_space<vmem>>) attributes {dimension_semantics = [#tpu.dimension_semantics<arbitrary>], iteration_bounds = array<i64: 1>, scalar_prefetch = 0 : i64, scratch_operands = 4 : i64, tpu.core_type = #tpu.core_type<tc>, window_params = [{transform_indices = @transform_0, window_bounds = array<i64: 5, 64>}, {transform_indices = @transform_1, window_bounds = array<i64: 1, 64>}, {transform_indices = @transform_2, window_bounds = array<i64: 2, 128>}, {transform_indices = @transform_3, window_bounds = array<i64: 2, 128>}, {transform_indices = @transform_4, window_bounds = array<i64: 1, 128>}, {transform_indices = @transform_5, window_bounds = array<i64: 1, 128>}, {transform_indices = @transform_6, window_bounds = array<i64: 1>}]} {
    %c0_i32 = arith.constant 0 : i32
    %0 = arith.cmpi eq, %arg0, %c0_i32 : i32
    %1 = arith.extui %0 : i1 to i32
    %c0_i32_0 = arith.constant 0 : i32
    %2 = arith.cmpi ne, %1, %c0_i32_0 : i32
    scf.if %2 {
      %cst_51 = arith.constant 0.000000e+00 : f32
      %105 = vector.broadcast %cst_51 : f32 to vector<1x64xf32>
      %c0_52 = arith.constant 0 : index
      %c0_53 = arith.constant 0 : index
      %106 = vector.load %arg8[%c0_52, %c0_53] : memref<1x64xf32, #tpu.memory_space<vmem>>, vector<1x64xf32>
      tpu.vector_store %arg8[%c0_52, %c0_53], %105 {strides = array<i32>} : memref<1x64xf32, #tpu.memory_space<vmem>>, vector<1x64xf32>,
      %cst_54 = arith.constant 0.000000e+00 : f32
      %107 = vector.broadcast %cst_54 : f32 to vector<1x64xf32>
      %c0_55 = arith.constant 0 : index
      %c0_56 = arith.constant 0 : index
      %108 = vector.load %arg9[%c0_55, %c0_56] : memref<1x64xf32, #tpu.memory_space<vmem>>, vector<1x64xf32>
      tpu.vector_store %arg9[%c0_55, %c0_56], %107 {strides = array<i32>} : memref<1x64xf32, #tpu.memory_space<vmem>>, vector<1x64xf32>,
      %cst_57 = arith.constant 0.000000e+00 : f32
      %109 = vector.broadcast %cst_57 : f32 to vector<2x128xf32>
      %c0_58 = arith.constant 0 : index
      %c0_59 = arith.constant 0 : index
      %110 = vector.load %arg10[%c0_58, %c0_59] : memref<2x128xf32, #tpu.memory_space<vmem>>, vector<2x128xf32>
      tpu.vector_store %arg10[%c0_58, %c0_59], %109 {strides = array<i32>} : memref<2x128xf32, #tpu.memory_space<vmem>>, vector<2x128xf32>,
      %cst_60 = arith.constant 0.000000e+00 : f32
      %111 = vector.broadcast %cst_60 : f32 to vector<1x128xf32>
      %c0_61 = arith.constant 0 : index
      %c0_62 = arith.constant 0 : index
      %112 = vector.load %arg11[%c0_61, %c0_62] : memref<1x128xf32, #tpu.memory_space<vmem>>, vector<1x128xf32>
      tpu.vector_store %arg11[%c0_61, %c0_62], %111 {strides = array<i32>} : memref<1x128xf32, #tpu.memory_space<vmem>>, vector<1x128xf32>,
    } else {
    }
    %c0 = arith.constant 0 : index
    %c0_1 = arith.constant 0 : index
    %3 = vector.load %arg1[%c0, %c0_1] : memref<5x64xf32, #tpu.memory_space<vmem>>, vector<5x64xf32>
    %c0_2 = arith.constant 0 : index
    %c0_3 = arith.constant 0 : index
    %4 = vector.load %arg2[%c0_2, %c0_3] : memref<1x64xi32, #tpu.memory_space<vmem>>, vector<1x64xi32>
    %cst = arith.constant dense<0xFF800000> : vector<64xf32>
    %5 = vector.multi_reduction <maximumf>, %3, %cst [0] : vector<5x64xf32> to vector<64xf32>
    %6 = vector.shape_cast %5 : vector<64xf32> to vector<1x64xf32>
    %7 = vector.broadcast %6 : vector<1x64xf32> to vector<5x64xf32>
    %8 = arith.subf %3, %7 : vector<5x64xf32>
    %9 = math.exp %8 : vector<5x64xf32>
    %cst_4 = arith.constant dense<0.000000e+00> : vector<64xf32>
    %10 = vector.multi_reduction <add>, %9, %cst_4 [0] : vector<5x64xf32> to vector<64xf32>
    %11 = vector.shape_cast %10 : vector<64xf32> to vector<1x64xf32>
    %12 = math.log %11 : vector<1x64xf32>
    %13 = arith.addf %6, %12 : vector<1x64xf32>
    %14 = tpu.iota {dimensions = array<i32: 0>} : vector<5x64xi32>
    %15 = vector.broadcast %4 : vector<1x64xi32> to vector<5x64xi32>
    %16 = arith.cmpi eq, %14, %15 : vector<5x64xi32>
    %17 = arith.extui %16 : vector<5x64xi1> to vector<5x64xi32>
    %18 = arith.sitofp %17 : vector<5x64xi32> to vector<5x64xf32>
    %19 = arith.mulf %3, %18 : vector<5x64xf32>
    %cst_5 = arith.constant dense<0.000000e+00> : vector<64xf32>
    %20 = vector.multi_reduction <add>, %19, %cst_5 [0] : vector<5x64xf32> to vector<64xf32>
    %21 = vector.shape_cast %20 : vector<64xf32> to vector<1x64xf32>
    %cst_6 = arith.constant 0.000000e+00 : f32
    %22 = vector.broadcast %cst_6 : f32 to vector<1x64xf32>
    %c0_i32_7 = arith.constant 0 : i32
    %23 = vector.broadcast %c0_i32_7 : i32 to vector<1x64xi32>
    %24 = arith.cmpi eq, %4, %23 : vector<1x64xi32>
    %cst_8 = arith.constant 1.000000e+00 : f32
    %25 = vector.broadcast %cst_8 : f32 to vector<1x64xf32>
    %26 = arith.select %24, %25, %22 : vector<1x64xi1>, vector<1x64xf32>
    %c1_i32 = arith.constant 1 : i32
    %27 = vector.broadcast %c1_i32 : i32 to vector<1x64xi32>
    %28 = arith.cmpi eq, %4, %27 : vector<1x64xi32>
    %cst_9 = arith.constant 8.000000e-01 : f32
    %29 = vector.broadcast %cst_9 : f32 to vector<1x64xf32>
    %30 = arith.select %28, %29, %26 : vector<1x64xi1>, vector<1x64xf32>
    %c2_i32 = arith.constant 2 : i32
    %31 = vector.broadcast %c2_i32 : i32 to vector<1x64xi32>
    %32 = arith.cmpi eq, %4, %31 : vector<1x64xi32>
    %cst_10 = arith.constant 1.200000e+00 : f32
    %33 = vector.broadcast %cst_10 : f32 to vector<1x64xf32>
    %34 = arith.select %32, %33, %30 : vector<1x64xi1>, vector<1x64xf32>
    %c3_i32 = arith.constant 3 : i32
    %35 = vector.broadcast %c3_i32 : i32 to vector<1x64xi32>
    %36 = arith.cmpi eq, %4, %35 : vector<1x64xi32>
    %cst_11 = arith.constant 1.500000e+00 : f32
    %37 = vector.broadcast %cst_11 : f32 to vector<1x64xf32>
    %38 = arith.select %36, %37, %34 : vector<1x64xi1>, vector<1x64xf32>
    %c4_i32 = arith.constant 4 : i32
    %39 = vector.broadcast %c4_i32 : i32 to vector<1x64xi32>
    %40 = arith.cmpi eq, %4, %39 : vector<1x64xi32>
    %cst_12 = arith.constant 2.000000e+00 : f32
    %41 = vector.broadcast %cst_12 : f32 to vector<1x64xf32>
    %42 = arith.select %40, %41, %38 : vector<1x64xi1>, vector<1x64xf32>
    %43 = arith.subf %13, %21 : vector<1x64xf32>
    %44 = arith.mulf %42, %43 : vector<1x64xf32>
    %c0_13 = arith.constant 0 : index
    %c0_14 = arith.constant 0 : index
    %45 = vector.load %arg8[%c0_13, %c0_14] : memref<1x64xf32, #tpu.memory_space<vmem>>, vector<1x64xf32>
    %46 = arith.addf %45, %44 : vector<1x64xf32>
    %c0_15 = arith.constant 0 : index
    %c0_16 = arith.constant 0 : index
    %47 = vector.load %arg8[%c0_15, %c0_16] : memref<1x64xf32, #tpu.memory_space<vmem>>, vector<1x64xf32>
    tpu.vector_store %arg8[%c0_15, %c0_16], %46 {strides = array<i32>} : memref<1x64xf32, #tpu.memory_space<vmem>>, vector<1x64xf32>,
    %c0_17 = arith.constant 0 : index
    %c0_18 = arith.constant 0 : index
    %48 = vector.load %arg9[%c0_17, %c0_18] : memref<1x64xf32, #tpu.memory_space<vmem>>, vector<1x64xf32>
    %49 = arith.addf %48, %42 : vector<1x64xf32>
    %c0_19 = arith.constant 0 : index
    %c0_20 = arith.constant 0 : index
    %50 = vector.load %arg9[%c0_19, %c0_20] : memref<1x64xf32, #tpu.memory_space<vmem>>, vector<1x64xf32>
    tpu.vector_store %arg9[%c0_19, %c0_20], %49 {strides = array<i32>} : memref<1x64xf32, #tpu.memory_space<vmem>>, vector<1x64xf32>,
    %c0_21 = arith.constant 0 : index
    %c0_22 = arith.constant 0 : index
    %51 = vector.load %arg3[%c0_21, %c0_22] : memref<2x128xf32, #tpu.memory_space<vmem>>, vector<2x128xf32>
    %c0_23 = arith.constant 0 : index
    %c0_24 = arith.constant 0 : index
    %52 = vector.load %arg4[%c0_23, %c0_24] : memref<2x128xf32, #tpu.memory_space<vmem>>, vector<2x128xf32>
    %cst_25 = arith.constant 0.000000e+00 : f32
    %53 = vector.broadcast %cst_25 : f32 to vector<2x128xf32>
    %54 = arith.subf %53, %51 : vector<2x128xf32>
    %cst_26 = arith.constant 0.000000e+00 : f32
    %55 = vector.broadcast %cst_26 : f32 to vector<2x128xf32>
    %56 = arith.maximumf %54, %55 : vector<2x128xf32>
    %57 = math.absf %51 : vector<2x128xf32>
    %cst_27 = arith.constant 0.000000e+00 : f32
    %58 = vector.broadcast %cst_27 : f32 to vector<2x128xf32>
    %59 = arith.subf %58, %57 : vector<2x128xf32>
    %60 = math.exp %59 : vector<2x128xf32>
    %61 = math.log1p %60 : vector<2x128xf32>
    %62 = arith.addf %56, %61 : vector<2x128xf32>
    %cst_28 = arith.constant 1.000000e+00 : f32
    %63 = vector.broadcast %cst_28 : f32 to vector<2x128xf32>
    %64 = arith.subf %63, %52 : vector<2x128xf32>
    %65 = arith.mulf %64, %51 : vector<2x128xf32>
    %cst_29 = arith.constant 6.500000e+00 : f32
    %66 = vector.broadcast %cst_29 : f32 to vector<2x128xf32>
    %67 = arith.mulf %66, %52 : vector<2x128xf32>
    %cst_30 = arith.constant 1.000000e+00 : f32
    %68 = vector.broadcast %cst_30 : f32 to vector<2x128xf32>
    %69 = arith.addf %68, %67 : vector<2x128xf32>
    %70 = arith.mulf %69, %62 : vector<2x128xf32>
    %71 = arith.addf %65, %70 : vector<2x128xf32>
    %c0_31 = arith.constant 0 : index
    %c0_32 = arith.constant 0 : index
    %72 = vector.load %arg10[%c0_31, %c0_32] : memref<2x128xf32, #tpu.memory_space<vmem>>, vector<2x128xf32>
    %73 = arith.addf %72, %71 : vector<2x128xf32>
    %c0_33 = arith.constant 0 : index
    %c0_34 = arith.constant 0 : index
    %74 = vector.load %arg10[%c0_33, %c0_34] : memref<2x128xf32, #tpu.memory_space<vmem>>, vector<2x128xf32>
    tpu.vector_store %arg10[%c0_33, %c0_34], %73 {strides = array<i32>} : memref<2x128xf32, #tpu.memory_space<vmem>>, vector<2x128xf32>,
    %c0_35 = arith.constant 0 : index
    %c0_36 = arith.constant 0 : index
    %75 = vector.load %arg5[%c0_35, %c0_36] : memref<1x128xf32, #tpu.memory_space<vmem>>, vector<1x128xf32>
    %c0_37 = arith.constant 0 : index
    %c0_38 = arith.constant 0 : index
    %76 = vector.load %arg6[%c0_37, %c0_38] : memref<1x128xf32, #tpu.memory_space<vmem>>, vector<1x128xf32>
    %cst_39 = arith.constant 0.000000e+00 : f32
    %77 = vector.broadcast %cst_39 : f32 to vector<1x128xf32>
    %78 = arith.subf %77, %75 : vector<1x128xf32>
    %cst_40 = arith.constant 0.000000e+00 : f32
    %79 = vector.broadcast %cst_40 : f32 to vector<1x128xf32>
    %80 = arith.maximumf %78, %79 : vector<1x128xf32>
    %81 = math.absf %75 : vector<1x128xf32>
    %cst_41 = arith.constant 0.000000e+00 : f32
    %82 = vector.broadcast %cst_41 : f32 to vector<1x128xf32>
    %83 = arith.subf %82, %81 : vector<1x128xf32>
    %84 = math.exp %83 : vector<1x128xf32>
    %85 = math.log1p %84 : vector<1x128xf32>
    %86 = arith.addf %80, %85 : vector<1x128xf32>
    %cst_42 = arith.constant 1.000000e+00 : f32
    %87 = vector.broadcast %cst_42 : f32 to vector<1x128xf32>
    %88 = arith.subf %87, %76 : vector<1x128xf32>
    %89 = arith.mulf %88, %75 : vector<1x128xf32>
    %cst_43 = arith.constant -0.949999988 : f32
    %90 = vector.broadcast %cst_43 : f32 to vector<1x128xf32>
    %91 = arith.mulf %90, %76 : vector<1x128xf32>
    %cst_44 = arith.constant 1.000000e+00 : f32
    %92 = vector.broadcast %cst_44 : f32 to vector<1x128xf32>
    %93 = arith.addf %92, %91 : vector<1x128xf32>
    %94 = arith.mulf %93, %86 : vector<1x128xf32>
    %95 = arith.addf %89, %94 : vector<1x128xf32>
    %c0_i32_45 = arith.constant 0 : i32
    %96 = arith.cmpi slt, %arg0, %c0_i32_45 : i32
    %97 = arith.extui %96 : i1 to i32
    %c0_i32_46 = arith.constant 0 : i32
    %98 = arith.cmpi ne, %97, %c0_i32_46 : i32
    scf.if %98 {
      %c0_51 = arith.constant 0 : index
      %c0_52 = arith.constant 0 : index
      %105 = vector.load %arg11[%c0_51, %c0_52] : memref<1x128xf32, #tpu.memory_space<vmem>>, vector<1x128xf32>
      %106 = arith.addf %105, %95 : vector<1x128xf32>
      %c0_53 = arith.constant 0 : index
      %c0_54 = arith.constant 0 : index
      %107 = vector.load %arg11[%c0_53, %c0_54] : memref<1x128xf32, #tpu.memory_space<vmem>>, vector<1x128xf32>
      tpu.vector_store %arg11[%c0_53, %c0_54], %106 {strides = array<i32>} : memref<1x128xf32, #tpu.memory_space<vmem>>, vector<1x128xf32>,
    } else {
    }
    %c0_i32_47 = arith.constant 0 : i32
    %99 = arith.cmpi eq, %arg0, %c0_i32_47 : i32
    %100 = arith.extui %99 : i1 to i32
    %c0_i32_48 = arith.constant 0 : i32
    %101 = arith.cmpi ne, %100, %c0_i32_48 : i32
    scf.if %101 {
      %105 = tpu.iota {dimensions = array<i32: 0>} : vector<1x128xi32>
      %106 = tpu.iota {dimensions = array<i32: 1>} : vector<1x128xi32>
      %c1_i32_51 = arith.constant 1 : i32
      %107 = arith.muli %arg0, %c1_i32_51 : i32
      %108 = vector.broadcast %107 : i32 to vector<1x128xi32>
      %109 = arith.addi %108, %105 : vector<1x128xi32>
      %c128_i32 = arith.constant 128 : i32
      %110 = vector.broadcast %c128_i32 : i32 to vector<1x128xi32>
      %111 = arith.muli %109, %110 : vector<1x128xi32>
      %112 = arith.addi %111, %106 : vector<1x128xi32>
      %c0_52 = arith.constant 0 : index
      %c0_53 = arith.constant 0 : index
      %113 = vector.load %arg11[%c0_52, %c0_53] : memref<1x128xf32, #tpu.memory_space<vmem>>, vector<1x128xf32>
      %c64_i32 = arith.constant 64 : i32
      %114 = vector.broadcast %c64_i32 : i32 to vector<1x128xi32>
      %115 = arith.cmpi slt, %112, %114 : vector<1x128xi32>
      %cst_54 = arith.constant 0.000000e+00 : f32
      %116 = vector.broadcast %cst_54 : f32 to vector<1x128xf32>
      %117 = arith.select %115, %95, %116 : vector<1x128xi1>, vector<1x128xf32>
      %118 = arith.addf %113, %117 : vector<1x128xf32>
      %c0_55 = arith.constant 0 : index
      %c0_56 = arith.constant 0 : index
      %119 = vector.load %arg11[%c0_55, %c0_56] : memref<1x128xf32, #tpu.memory_space<vmem>>, vector<1x128xf32>
      tpu.vector_store %arg11[%c0_55, %c0_56], %118 {strides = array<i32>} : memref<1x128xf32, #tpu.memory_space<vmem>>, vector<1x128xf32>,
    } else {
    }
    %c0_i32_49 = arith.constant 0 : i32
    %102 = arith.cmpi eq, %arg0, %c0_i32_49 : i32
    %103 = arith.extui %102 : i1 to i32
    %c0_i32_50 = arith.constant 0 : i32
    %104 = arith.cmpi ne, %103, %c0_i32_50 : i32
    scf.if %104 {
      %c0_51 = arith.constant 0 : index
      %c0_52 = arith.constant 0 : index
      %105 = vector.load %arg8[%c0_51, %c0_52] : memref<1x64xf32, #tpu.memory_space<vmem>>, vector<1x64xf32>
      %106 = vector.shape_cast %105 : vector<1x64xf32> to vector<1x1x64xf32>
      %cst_53 = arith.constant dense<0.000000e+00> : vector<1xf32>
      %107 = vector.multi_reduction <add>, %106, %cst_53 [1, 2] : vector<1x1x64xf32> to vector<1xf32>
      %108 = vector.shape_cast %107 : vector<1xf32> to vector<1x1x1xf32>
      %109 = vector.extract %108[0, 0, 0] : f32 from vector<1x1x1xf32>
      %c0_54 = arith.constant 0 : index
      %c0_55 = arith.constant 0 : index
      %110 = vector.load %arg9[%c0_54, %c0_55] : memref<1x64xf32, #tpu.memory_space<vmem>>, vector<1x64xf32>
      %111 = vector.shape_cast %110 : vector<1x64xf32> to vector<1x1x64xf32>
      %cst_56 = arith.constant dense<0.000000e+00> : vector<1xf32>
      %112 = vector.multi_reduction <add>, %111, %cst_56 [1, 2] : vector<1x1x64xf32> to vector<1xf32>
      %113 = vector.shape_cast %112 : vector<1xf32> to vector<1x1x1xf32>
      %114 = vector.extract %113[0, 0, 0] : f32 from vector<1x1x1xf32>
      %c0_57 = arith.constant 0 : index
      %c0_58 = arith.constant 0 : index
      %115 = vector.load %arg10[%c0_57, %c0_58] : memref<2x128xf32, #tpu.memory_space<vmem>>, vector<2x128xf32>
      %116 = vector.shape_cast %115 : vector<2x128xf32> to vector<1x2x128xf32>
      %cst_59 = arith.constant dense<0.000000e+00> : vector<1xf32>
      %117 = vector.multi_reduction <add>, %116, %cst_59 [1, 2] : vector<1x2x128xf32> to vector<1xf32>
      %118 = vector.shape_cast %117 : vector<1xf32> to vector<1x1x1xf32>
      %119 = vector.extract %118[0, 0, 0] : f32 from vector<1x1x1xf32>
      %c0_60 = arith.constant 0 : index
      %c0_61 = arith.constant 0 : index
      %120 = vector.load %arg11[%c0_60, %c0_61] : memref<1x128xf32, #tpu.memory_space<vmem>>, vector<1x128xf32>
      %121 = vector.shape_cast %120 : vector<1x128xf32> to vector<1x1x128xf32>
      %cst_62 = arith.constant dense<0.000000e+00> : vector<1xf32>
      %122 = vector.multi_reduction <add>, %121, %cst_62 [1, 2] : vector<1x1x128xf32> to vector<1xf32>
      %123 = vector.shape_cast %122 : vector<1xf32> to vector<1x1x1xf32>
      %124 = vector.extract %123[0, 0, 0] : f32 from vector<1x1x1xf32>
      %125 = arith.divf %109, %114 : f32
      %cst_63 = arith.constant 1.000000e+00 : f32
      %126 = arith.mulf %cst_63, %125 : f32
      %cst_64 = arith.constant 2.560000e+02 : f32
      %127 = arith.divf %119, %cst_64 : f32
      %cst_65 = arith.constant 2.000000e+00 : f32
      %128 = arith.mulf %cst_65, %127 : f32
      %129 = arith.addf %126, %128 : f32
      %cst_66 = arith.constant 6.400000e+01 : f32
      %130 = arith.divf %124, %cst_66 : f32
      %cst_67 = arith.constant 5.000000e-01 : f32
      %131 = arith.mulf %cst_67, %130 : f32
      %132 = arith.addf %129, %131 : f32
      %c0_68 = arith.constant 0 : index
      %133 = memref.load %arg7[%c0_68] : memref<1xf32, #tpu.memory_space<smem>>
      memref.store %132, %arg7[%c0_68] : memref<1xf32, #tpu.memory_space<smem>>
    } else {
    }
    return
  }
  func.func @transform_0(%arg0: i32) -> (i32, i32) {
    %c0_i32 = arith.constant 0 : i32
    %0 = arith.minsi %arg0, %c0_i32 : i32
    %c0_i32_0 = arith.constant 0 : i32
    %c0_i32_1 = arith.constant 0 : i32
    return %c0_i32_0, %0 : i32, i32
  }
  func.func @transform_1(%arg0: i32) -> (i32, i32) {
    %c0_i32 = arith.constant 0 : i32
    %0 = arith.minsi %arg0, %c0_i32 : i32
    %c0_i32_0 = arith.constant 0 : i32
    %c0_i32_1 = arith.constant 0 : i32
    return %c0_i32_0, %0 : i32, i32
  }
  func.func @transform_2(%arg0: i32) -> (i32, i32) {
    %c0_i32 = arith.constant 0 : i32
    %0 = arith.minsi %arg0, %c0_i32 : i32
    %c0_i32_0 = arith.constant 0 : i32
    %c0_i32_1 = arith.constant 0 : i32
    return %0, %c0_i32_0 : i32, i32
  }
  func.func @transform_3(%arg0: i32) -> (i32, i32) {
    %c0_i32 = arith.constant 0 : i32
    %0 = arith.minsi %arg0, %c0_i32 : i32
    %c0_i32_0 = arith.constant 0 : i32
    %c0_i32_1 = arith.constant 0 : i32
    return %0, %c0_i32_0 : i32, i32
  }
  func.func @transform_4(%arg0: i32) -> (i32, i32) {
    %c0_i32 = arith.constant 0 : i32
    %0 = arith.minsi %arg0, %c0_i32 : i32
    %c0_i32_0 = arith.constant 0 : i32
    %c0_i32_1 = arith.constant 0 : i32
    return %0, %c0_i32_0 : i32, i32
  }
  func.func @transform_5(%arg0: i32) -> (i32, i32) {
    %c0_i32 = arith.constant 0 : i32
    %0 = arith.minsi %arg0, %c0_i32 : i32
    %c0_i32_0 = arith.constant 0 : i32
    %c0_i32_1 = arith.constant 0 : i32
    return %0, %c0_i32_0 : i32, i32
  }
  func.func @transform_6(%arg0: i32) -> i32 {
    %c0_i32 = arith.constant 0 : i32
    %c0_i32_0 = arith.constant 0 : i32
    return %c0_i32 : i32
  }
}

</mosaic_0001>

<llo_original>
// kernel: tpu_custom_call.1
$region0: #{tpu_custom_call.1}
  #allocation0 [shape = 'u32[]', space=smem, size = 0x4, offset = 0x4, fixed_abs, tag = 'smem constant byte address 0x4 - core index']
  #allocation1 [shape = 'u32[144,128]{1,0:T(1,128)}', space=vmem, size = 0x12000, scoped, tag = 'internal scratch']
  #allocation2 [shape = 'f32[1,64]{1,0:T(1,128)}', space=vmem, size = 0x200, scoped, tag = 'scratch operand']
  #allocation3 [shape = 'f32[1,64]{1,0:T(1,128)}', space=vmem, size = 0x200, scoped, tag = 'scratch operand']
  #allocation4 [shape = 'f32[2,128]{1,0:T(2,128)}', space=vmem, size = 0x400, scoped, tag = 'scratch operand']
  #allocation5 [shape = 'f32[1,128]{1,0:T(1,128)}', space=vmem, size = 0x200, scoped, tag = 'scratch operand']
  %s0 = inlined_call_operand.hbm [shape: f32[5,64], index: 0, kind: input, shape index: {}]
  %s1 = inlined_call_operand.vmem [shape: s32[1,64], index: 1, kind: input, shape index: {}]
  %s2 = inlined_call_operand.vmem [shape: f32[2,128], index: 2, kind: input, shape index: {}]
  %s3 = inlined_call_operand.vmem [shape: f32[2,128], index: 3, kind: input, shape index: {}]
  %s4 = inlined_call_operand.vmem [shape: f32[1,128], index: 4, kind: input, shape index: {}]
  %s5 = inlined_call_operand.vmem [shape: f32[1,128], index: 5, kind: input, shape index: {}]
  %s6 = inlined_call_operand.hbm [shape: f32[1], index: 6, kind: output, shape index: {}]
  %s7 = sld [smem:[#allocation0]]
  $region50: #{tpu_custom_call.1} parent=0
    _
  %s9 = ssub.s32 1, %s7
  %s10 = scalar_select 0, %s9, %s7
  $region1: #{tpu_custom_call.1} parent=0
    #allocation6 [shape = 'u8[4096]{0}', space=vmem, size = 0x1000, scoped, tag = 'input window, operand 0, single buffered']
    #allocation7 [shape = 's32[1]{0}', space=sflag, size = 0x4, scoped, tag = 'scoped memory for tpu_custom_call.1']
    #allocation8 [shape = 's32[1]{0}', space=sflag, size = 0x4, scoped, tag = 'scoped memory for tpu_custom_call.1']
    #allocation9 [shape = 'u8[512]{0}', space=smem, size = 0x200, scoped, tag = 'output window, operand 0, single buffered']
    %11 = vsyncpa [#allocation7], 0
    %12 = vsyncpa [#allocation8], 0
    // Predicated region
    $region2: #{tpu_custom_call.1} parent=1 // pred_check
      _
    $region3: #{tpu_custom_call.1} parent=1 // pred_check_branch
      %14 = sbr.rel (0) target = $region5
    $region4: #{tpu_custom_call.1} parent=1 // pred_region
      %s16 = ssub.s32 128, 128
      %17 = vsyncadd [#allocation7], %s16
      %s19 = sshll.u32 [#allocation6], 4
      %s20 = int_to_ptr.vmem [resolvable:$true] %s19
      %22 = dma.hbm_to_vmem [thread:$0]  %s0, 128, %s20, [#allocation7]
    $region5: #{tpu_custom_call.1} parent=1 // pred_fallthru
      _
    // Predicated region
    $region6: #{tpu_custom_call.1} parent=1 // pred_check
      _
    $region7: #{tpu_custom_call.1} parent=1 // pred_check_branch
      %24 = sbr.rel (0) target = $region9
    $region8: #{tpu_custom_call.1} parent=1 // pred_region
      _
    $region9: #{tpu_custom_call.1} parent=1 // pred_fallthru
      _
    // Predicated region
    $region10: #{tpu_custom_call.1} parent=1 // pred_check
      _
    $region11: #{tpu_custom_call.1} parent=1 // pred_check_branch
      %26 = sbr.rel (0) target = $region13
    $region12: #{tpu_custom_call.1} parent=1 // pred_region
      _
    $region13: #{tpu_custom_call.1} parent=1 // pred_fallthru
      _
    // Predicated region
    $region14: #{tpu_custom_call.1} parent=1 // pred_check
      _
    $region15: #{tpu_custom_call.1} parent=1 // pred_check_branch
      %28 = sbr.rel (0) target = $region17
    $region16: #{tpu_custom_call.1} parent=1 // pred_region
      _
    $region17: #{tpu_custom_call.1} parent=1 // pred_fallthru
      _
    // Predicated region
    $region18: #{tpu_custom_call.1} parent=1 // pred_check
      _
    $region19: #{tpu_custom_call.1} parent=1 // pred_check_branch
      %30 = sbr.rel (0) target = $region21
    $region20: #{tpu_custom_call.1} parent=1 // pred_region
      _
    $region21: #{tpu_custom_call.1} parent=1 // pred_fallthru
      _
    // Predicated region
    $region22: #{tpu_custom_call.1} parent=1 // pred_check
      _
    $region23: #{tpu_custom_call.1} parent=1 // pred_check_branch
      %32 = sbr.rel (0) target = $region25
    $region24: #{tpu_custom_call.1} parent=1 // pred_region
      _
    $region25: #{tpu_custom_call.1} parent=1 // pred_fallthru
      _
    // Predicated region
    $region26: #{tpu_custom_call.1} parent=1 // pred_check
      _
    $region27: #{tpu_custom_call.1} parent=1 // pred_check_branch
      %34 = sbr.rel (0) target = $region29
    $region28: #{tpu_custom_call.1} parent=1 // pred_region
      %35 = dma.done [#allocation7], 128
    $region29: #{tpu_custom_call.1} parent=1 // pred_fallthru
      _
    %p36 = scmp.eq.s32.totalorder 0, 0
    // Predicated region
    $region30: #{tpu_custom_call.1} parent=1 // pred_check
      %p37 = pneg %p36
    $region31: #{tpu_custom_call.1} parent=1 // pred_check_branch
      %39 = sbr.rel (%p37) target = $region33
    $region32: #{tpu_custom_call.1} parent=1 // pred_region
      %vm40 = vcmask 516096
      %41 = vst.msk [vmem:[#allocation2] sm:$0x1] %vm40, 0.0
      %42 = vst.msk [vmem:[#allocation3] sm:$0x1] %vm40, 0.0
      %43 = vst [vmem:[#allocation4] sm:$0x3] 0.0
      %44 = vst [vmem:[#allocation5] sm:$0x1] 0.0
    $region33: #{tpu_custom_call.1} parent=1 // pred_fallthru
      _
    %v45 = vld [vmem:[#allocation6] sm:$0x1f]
    %v46 = vld [vmem:[%s1] sm:$0x1]
    %vm47 = vcmask 520192
    %v48 = vsel %vm47, %v45, -inf
    %v49 = vrot.slane %v48, 4
    %v50 = vmax.f32 %v48, %v49
    %v51 = vrot.slane %v50, 2
    %v52 = vmax.f32 %v50, %v51
    %v53 = vrot.slane %v52, 1
    %v54 = vmax.f32 %v52, %v53
    %v55 = vsub.f32 %v45, %v54
    %v56 = vmul.f32 %v55, 1.442695
    %v57 = vpow.pop %v56
    %v58 = vsel %vm47, %v57, 0.0
    %v59 = vrot.slane %v58, 4
    %v60 = vadd.f32 %v58, %v59
    %v61 = vrot.slane %v60, 2
    %v62 = vadd.f32 %v60, %v61
    %v63 = vrot.slane %v62, 1
    %v64 = vadd.f32 %v62, %v63
    %v65 = vlog2.pop %v64
    %v66 = vmul.f32 %v65, 0.6931472
    %v67 = vadd.f32 %v54, %v66
    %v68 = vlaneseq
    %v69 = vshrl.u32 %v68, 7
    %v70 = vlaneseq
    %v71 = vshrl.u32 %v70, 7
    %v72 = vsub.s32 0, %v71
    %v73 = vrot.slane %v46, %v72
    %vm74 = vcmp.eq.s32.totalorder %v69, %v73
    %v75 = vsel %vm74, 1, 0
    %v76 = vcvt.s32.f32 %v75
    %v77 = vmul.f32 %v45, %v76
    %v78 = vsel %vm47, %v77, 0.0
    %v79 = vrot.slane %v78, 4
    %v80 = vadd.f32 %v78, %v79
    %v81 = vrot.slane %v80, 2
    %v82 = vadd.f32 %v80, %v81
    %v83 = vrot.slane %v82, 1
    %v84 = vadd.f32 %v82, %v83
    %vm85 = vcmp.eq.s32.totalorder %v46, 0
    %v86 = vsel %vm85, 1.0, 0.0
    %vm87 = vcmp.eq.s32.totalorder %v46, 1
    %v88 = vsel %vm87, 0.8, %v86
    %vm89 = vcmp.eq.s32.totalorder %v46, 2
    %v90 = vsel %vm89, 1.2, %v88
    %vm91 = vcmp.eq.s32.totalorder %v46, 3
    %v92 = vsel %vm91, 1.5, %v90
    %vm93 = vcmp.eq.s32.totalorder %v46, 4
    %v94 = vsel %vm93, 2.0, %v92
    %v95 = vsub.f32 %v67, %v84
    %v96 = vmul.f32 %v94, %v95
    %v97 = vld [vmem:[#allocation2] sm:$0x1]
    %v98 = vadd.f32 %v97, %v96
    %vm99 = vcmask 516096
    %100 = vst.msk [vmem:[#allocation2] sm:$0x1] %vm99, %v98
    %v101 = vld [vmem:[#allocation3] sm:$0x1]
    %v102 = vadd.f32 %v101, %v94
    %103 = vst.msk [vmem:[#allocation3] sm:$0x1] %vm99, %v102
    %v104 = vld [vmem:[%s2] sm:$0x3]
    %v105 = vld [vmem:[%s3] sm:$0x3]
    %v106 = vsub.f32 0.0, %v104
    %v107 = vmax.f32 %v106, 0.0
    %v108 = vand.u32 2147483647, %v104
    %v109 = vsub.f32 0.0, %v108
    %v110 = vmul.f32 %v109, 1.442695
    %v111 = vpow.pop %v110
    %v112 = vadd.f32 %v111, 1.0
    %v113 = vlog2.pop %v112
    %v114 = vmul.f32 %v113, 0.6931472
    %v115 = vmul.f32 -0.5, %v111
    %v116 = vadd.f32 %v115, 1.0
    %v117 = vmul.f32 %v116, %v111
    %v118 = vand.u32 2147483647, %v111
    %vm119 = vcmp.lt.f32.partialorder %v118, 0.0004427343
    %v120 = vsel %vm119, %v117, %v114
    %v121 = vadd.f32 %v107, %v120
    %v122 = vsub.f32 1.0, %v105
    %v123 = vmul.f32 %v122, %v104
    %v124 = vmul.f32 %v105, 6.5
    %v125 = vadd.f32 %v124, 1.0
    %v126 = vmul.f32 %v125, %v121
    %v127 = vadd.f32 %v123, %v126
    %v128 = vld [vmem:[#allocation4] sm:$0x3]
    %v129 = vadd.f32 %v128, %v127
    %130 = vst [vmem:[#allocation4] sm:$0x3] %v129
    %v131 = vld [vmem:[%s4] sm:$0x1]
    %v132 = vld [vmem:[%s5] sm:$0x1]
    %v133 = vsub.f32 0.0, %v131
    %v134 = vmax.f32 %v133, 0.0
    %v135 = vand.u32 2147483647, %v131
    %v136 = vsub.f32 0.0, %v135
    %v137 = vmul.f32 %v136, 1.442695
    %v138 = vpow.pop %v137
    %v139 = vadd.f32 %v138, 1.0
    %v140 = vlog2.pop %v139
    %v141 = vmul.f32 %v140, 0.6931472
    %v142 = vmul.f32 -0.5, %v138
    %v143 = vadd.f32 %v142, 1.0
    %v144 = vmul.f32 %v143, %v138
    %v145 = vand.u32 2147483647, %v138
    %vm146 = vcmp.lt.f32.partialorder %v145, 0.0004427343
    %v147 = vsel %vm146, %v144, %v141
    %v148 = vadd.f32 %v134, %v147
    %v149 = vsub.f32 1.0, %v132
    %v150 = vmul.f32 %v149, %v131
    %v151 = vmul.f32 %v132, -0.95
    %v152 = vadd.f32 %v151, 1.0
    %v153 = vmul.f32 %v152, %v148
    %v154 = vadd.f32 %v150, %v153
    %p155 = scmp.lt.s32.totalorder 0, 0
    // Predicated region
    $region34: #{tpu_custom_call.1} parent=1 // pred_check
      %p156 = pneg %p155
    $region35: #{tpu_custom_call.1} parent=1 // pred_check_branch
      %158 = sbr.rel (%p156) target = $region37
    $region36: #{tpu_custom_call.1} parent=1 // pred_region
      %v159 = vld [vmem:[#allocation5] sm:$0x1]
      %v160 = vadd.f32 %v159, %v154
      %161 = vst [vmem:[#allocation5] sm:$0x1] %v160
    $region37: #{tpu_custom_call.1} parent=1 // pred_fallthru
      _
    // Predicated region
    $region38: #{tpu_custom_call.1} parent=1 // pred_check
      %p162 = pneg %p36
    $region39: #{tpu_custom_call.1} parent=1 // pred_check_branch
      %164 = sbr.rel (%p162) target = $region41
    $region40: #{tpu_custom_call.1} parent=1 // pred_region
      %v165 = vlaneseq
      %v166 = vand.u32 %v165, 127
      %v167 = vstv 0
      %v168 = vadd.s32 %v167, %v69
      %v169 = vmul.u32 %v168, 128
      %v170 = vadd.s32 %v169, %v166
      %v171 = vld [vmem:[#allocation5] sm:$0x1]
      %vm172 = vcmp.lt.s32.totalorder %v170, 64
      %v173 = vsel %vm172, %v154, 0.0
      %v174 = vadd.f32 %v171, %v173
      %175 = vst [vmem:[#allocation5] sm:$0x1] %v174
      %v176 = vld [vmem:[#allocation2] sm:$0x1]
      %v177 = vsel %vm99, %v176, 0.0
      %178 = vadd.xlane.f32.xlu0 %v177
      %v179 = vpop.xlane.xlu0 %178
      %v180 = vrot.slane %v179, 4
      %v181 = vadd.f32 %v179, %v180
      %v182 = vrot.slane %v181, 2
      %v183 = vadd.f32 %v181, %v182
      %v184 = vrot.slane %v183, 1
      %v185 = vadd.f32 %v183, %v184
      %s186 = vtos %v185
      %v187 = vld [vmem:[#allocation3] sm:$0x1]
      %v188 = vsel %vm99, %v187, 0.0
      %189 = vadd.xlane.f32.xlu0 %v188
      %v190 = vpop.xlane.xlu0 %189
      %v191 = vrot.slane %v190, 4
      %v192 = vadd.f32 %v190, %v191
      %v193 = vrot.slane %v192, 2
      %v194 = vadd.f32 %v192, %v193
      %v195 = vrot.slane %v194, 1
      %v196 = vadd.f32 %v194, %v195
      %s197 = vtos %v196
      %v198 = vld [vmem:[#allocation4] sm:$0x3]
      %vm199 = vcmask 1041408
      %v200 = vsel %vm199, %v198, 0.0
      %201 = vadd.xlane.f32.xlu0 %v200
      %v202 = vpop.xlane.xlu0 %201
      %v203 = vrot.slane %v202, 4
      %v204 = vadd.f32 %v202, %v203
      %v205 = vrot.slane %v204, 2
      %v206 = vadd.f32 %v204, %v205
      %v207 = vrot.slane %v206, 1
      %v208 = vadd.f32 %v206, %v207
      %s209 = vtos %v208
      %v210 = vld [vmem:[#allocation5] sm:$0x1]
      %vm211 = vcmask 1040384
      %v212 = vsel %vm211, %v210, 0.0
      %213 = vadd.xlane.f32.xlu0 %v212
      %v214 = vpop.xlane.xlu0 %213
      %v215 = vrot.slane %v214, 4
      %v216 = vadd.f32 %v214, %v215
      %v217 = vrot.slane %v216, 2
      %v218 = vadd.f32 %v216, %v217
      %v219 = vrot.slane %v218, 1
      %v220 = vadd.f32 %v218, %v219
      %s221 = vtos %v220
      %v222 = vstv %s197
      %v223 = vrcp.pop %v222
      %s224 = vtos %v223
      %s225 = smul.f32 %s186, %s224
      %v226 = vrcp.pop 256.0
      %s227 = vtos %v226
      %s228 = smul.f32 %s209, %s227
      %s229 = smul.f32 %s228, 2.0
      %s230 = sadd.f32 %s225, %s229
      %v231 = vrcp.pop 64.0
      %s232 = vtos %v231
      %s233 = smul.f32 %s221, %s232
      %s234 = smul.f32 %s233, 0.5
      %s235 = sadd.f32 %s230, %s234
      %s236 = scalar_lea.smem [#allocation9], 0
      %237 = sst [smem:[%s236]] %s235
    $region41: #{tpu_custom_call.1} parent=1 // pred_fallthru
      _
    // Predicated region
    $region42: #{tpu_custom_call.1} parent=1 // pred_check
      _
    $region43: #{tpu_custom_call.1} parent=1 // pred_check_branch
      %239 = sbr.rel (0) target = $region45
    $region44: #{tpu_custom_call.1} parent=1 // pred_region
      %s241 = ssub.s32 16, 16
      %242 = vsyncadd [#allocation8], %s241
      %245 = dma.smem_to_hbm [#allocation9], 16, %s6, [#allocation8]
    $region45: #{tpu_custom_call.1} parent=1 // pred_fallthru
      _
    // Predicated region
    $region46: #{tpu_custom_call.1} parent=1 // pred_check
      _
    $region47: #{tpu_custom_call.1} parent=1 // pred_check_branch
      %247 = sbr.rel (0) target = $region49
    $region48: #{tpu_custom_call.1} parent=1 // pred_region
      %248 = dma.done [#allocation8], 16
    $region49: #{tpu_custom_call.1} parent=1 // pred_fallthru
      _
    %249 = sfence
    %250 = vsyncpa [#allocation7], 1
    %251 = vsyncpa [#allocation8], 1

</llo_original>
